<compile_context>
chip_gen: v7x
topology: tpu7x:2x2x1
jax: 0.10.0
libtpu: 0.0.40
codegen_flags: <defaults>
</compile_context>

<pallas_src>
import functools

import jax
import jax.numpy as jnp
from jax.experimental import pallas as pl
from jax.experimental.pallas import tpu as pltpu

LEAKY_SLOPE = 0.2
BN_EPS = 1e-5


def _round_up(v, m):
    return ((v + m - 1) // m) * m


def _tpu_budget():
    """Return (vmem_limit_bytes, max_tile_hw), generation-aware (v7x: 64 MiB/TC)."""
    vmem_cap = 64 * 1024 * 1024                     # conservative fallback (v7x-class)
    try:
        info = pltpu.get_tpu_info()
        vmem_cap = int(getattr(info, "vmem_capacity_bytes", vmem_cap))
    except Exception:
        pass
    if vmem_cap >= 100 * 1024 * 1024:               # v5e / v6e: 128 MiB per TensorCore
        return 80 * 1024 * 1024, 16384
    return 40 * 1024 * 1024, 8192                   # v7x-class: 64 MiB per TensorCore


def _leaky(x):
    return jnp.where(x > 0, x, LEAKY_SLOPE * x)


def _conv12(x_ref, w1t_ref, b1_ref, w2t_ref):
    """conv1(+bias) + LeakyReLU + conv2 for one (C, TILE_HW) pixel tile -> f32 (C2, TILE_HW)."""
    x = x_ref[0].astype(jnp.bfloat16)                                   # (C, TILE_HW)
    h1 = jnp.dot(w1t_ref[...], x, preferred_element_type=jnp.float32) + b1_ref[...]
    h1 = _leaky(h1)                                                     # (ndf, TILE_HW)
    h2 = jnp.dot(w2t_ref[...], h1.astype(jnp.bfloat16),
                 preferred_element_type=jnp.float32)                    # (C2, TILE_HW)
    return h2


def bn_stats_kernel(x_ref, w1t_ref, b1_ref, w2t_ref, out_ref, sum_ref, sumsq_ref,
                    *, hw, tile_hw, tiles_per_split, needs_mask):
    """Pass 1: per-core partial per-channel sum / sumsq of h2 -> (1, C2, 2) slab."""
    s = pl.program_id(0)
    b = pl.program_id(1)
    t = pl.program_id(2)

    @pl.when(jnp.logical_and(b == 0, t == 0))
    def _init():
        sum_ref[...] = jnp.zeros_like(sum_ref)
        sumsq_ref[...] = jnp.zeros_like(sumsq_ref)

    h2 = _conv12(x_ref, w1t_ref, b1_ref, w2t_ref)                       # (C2, TILE_HW) f32

    if needs_mask:
        # Mask out padded pixel columns (padding only exists at the end of the hw axis).
        col0 = (s * tiles_per_split + t) * tile_hw
        cols = col0 + jax.lax.broadcasted_iota(jnp.int32, (1, tile_hw), 1)
        h2 = jnp.where(cols < hw, h2, 0.0)

    sum_ref[...] += jnp.sum(h2, axis=1, keepdims=True)                  # (C2, 1)
    sumsq_ref[...] += jnp.sum(h2 * h2, axis=1, keepdims=True)           # (C2, 1)

    @pl.when(jnp.logical_and(b == pl.num_programs(1) - 1,
                             t == pl.num_programs(2) - 1))
    def _finalize():
        out_ref[0, :, 0:1] = sum_ref[...]
        out_ref[0, :, 1:2] = sumsq_ref[...]


def bn_apply_kernel(x_ref, w1t_ref, b1_ref, w2t_ref, ss_ref, w3r_ref, o_ref):
    """Pass 2: recompute conv1/conv2, apply folded BN + LeakyReLU + conv3 (lane-dense out)."""
    h2 = _conv12(x_ref, w1t_ref, b1_ref, w2t_ref)                       # (C2, TILE_HW) f32
    scale = ss_ref[:, 0:1]
    shift = ss_ref[:, 1:2]
    h2n = _leaky(h2 * scale + shift)
    out = jnp.dot(w3r_ref[...], h2n.astype(jnp.bfloat16),
                  preferred_element_type=jnp.float32)                   # (1, TILE_HW)
    o_ref[0] = out.astype(o_ref.dtype)


def _resident(arr):
    """Full-array block with constant index_map -> DMA'd once, stays VMEM-resident."""
    nd = arr.ndim
    return pl.BlockSpec(arr.shape, lambda *_: (0,) * nd)


def pixel_discriminator(x_nchw, params, *, tile_hw=None):
    """x_nchw: (N, C, H, W) float32. Returns (N, 1, H, W) float32 (BatchNorm train-mode)."""
    n, c, h, w = x_nchw.shape
    hw = h * w
    total_pixels = n * hw

    vmem_limit, tile_cap = _tpu_budget()
    if tile_hw is None:
        tile_hw = min(tile_cap, _round_up(hw, 128))
    tile_hw = max(128, _round_up(int(tile_hw), 128))

    hw_tiles = pl.cdiv(hw, tile_hw)
    num_split = 2 if hw_tiles >= 2 else 1           # 2-way stats split (both TCs on v7x)
    if hw_tiles % num_split:
        hw_tiles += 1
    tiles_per_split = hw_tiles // num_split
    hw_pad = hw_tiles * tile_hw
    needs_mask = hw_pad != hw

    # Free relayout: NCHW -> (N, C, HW).  No transpose / no pre-cast HBM pass over x;
    # f32 is cast to bf16 inside the kernel.  Pad only if hw is ragged vs the tile grid.
    x3 = x_nchw.reshape(n, c, hw).astype(jnp.float32)
    if needs_mask:
        x3 = jnp.pad(x3, ((0, 0), (0, 0), (0, hw_pad - hw)))

    w1t = params["w1"].astype(jnp.bfloat16)                 # (ndf, C)
    b1c = params["b1"].reshape(-1, 1).astype(jnp.float32)   # (ndf, 1)
    w2t = params["w2"].astype(jnp.bfloat16)                 # (2*ndf, ndf)
    w3r = params["w3"].astype(jnp.bfloat16)                 # (1, 2*ndf)
    c2 = w2t.shape[0]

    # ---- Pass 1: partial BatchNorm statistics per core-split -------------------------
    partials = pl.pallas_call(
        functools.partial(bn_stats_kernel, hw=hw, tile_hw=tile_hw,
                          tiles_per_split=tiles_per_split, needs_mask=needs_mask),
        out_shape=jax.ShapeDtypeStruct((num_split, c2, 2), jnp.float32),
        grid=(num_split, n, tiles_per_split),
        in_specs=[
            pl.BlockSpec((1, c, tile_hw),
                         lambda s, b, t: (b, 0, s * tiles_per_split + t)),
            _resident(w1t), _resident(b1c), _resident(w2t),
        ],
        out_specs=pl.BlockSpec((1, c2, 2), lambda s, b, t: (s, 0, 0)),
        scratch_shapes=[pltpu.VMEM((c2, 1), jnp.float32),    # running sum
                        pltpu.VMEM((c2, 1), jnp.float32)],   # running sum of squares
        compiler_params=pltpu.CompilerParams(
            dimension_semantics=("parallel", "arbitrary", "arbitrary"),
            vmem_limit_bytes=vmem_limit),
    )(x3, w1t, b1c, w2t)

    # ---- Combine partials + fold BN into per-channel (scale, shift) in the wrapper ---
    totals = jnp.sum(partials, axis=0)                       # (c2, 2), tiny
    mean = totals[:, 0:1] / total_pixels
    # E[x^2]-E[x]^2 in f32; clamp guards cancellation (see docstring note).
    var = jnp.maximum(totals[:, 1:2] / total_pixels - mean * mean, 0.0)
    gamma_c = params["gamma"].reshape(-1, 1).astype(jnp.float32)
    beta_c = params["beta"].reshape(-1, 1).astype(jnp.float32)
    scale = gamma_c * jax.lax.rsqrt(var + BN_EPS)
    shift = beta_c - mean * scale
    ss = jnp.concatenate([scale, shift], axis=1)             # (c2, 2) f32

    # ---- Pass 2: recompute conv1/conv2, apply BN + LeakyReLU + conv3 -----------------
    out3 = pl.pallas_call(
        bn_apply_kernel,
        out_shape=jax.ShapeDtypeStruct((n, 1, hw_pad), jnp.float32),
        grid=(n, hw_tiles),
        in_specs=[
            pl.BlockSpec((1, c, tile_hw), lambda b, t: (b, 0, t)),
            _resident(w1t), _resident(b1c), _resident(w2t),
            _resident(ss), _resident(w3r),
        ],
        out_specs=pl.BlockSpec((1, 1, tile_hw), lambda b, t: (b, 0, t)),
        compiler_params=pltpu.CompilerParams(
            dimension_semantics=("parallel", "parallel"),     # both TCs on v7x
            vmem_limit_bytes=vmem_limit),
    )(x3, w1t, b1c, w2t, ss, w3r)

    return out3[:, :, :hw].reshape(n, 1, h, w)


def init_params(key, input_nc, ndf):
    """Deterministic synthetic parameters (shapes match the PyTorch module, (Cout, Cin))."""
    k1, k2, k3, k4 = jax.random.split(key, 4)
    w1 = 0.02 * jax.random.normal(k1, (ndf, input_nc), jnp.float32)
    b1 = jnp.zeros((ndf,), jnp.float32)
    w2 = 0.02 * jax.random.normal(k2, (2 * ndf, ndf), jnp.float32)
    gamma = 1.0 + 0.02 * jax.random.normal(k3, (2 * ndf,), jnp.float32)
    beta = jnp.zeros((2 * ndf,), jnp.float32)
    w3 = 0.02 * jax.random.normal(k4, (1, 2 * ndf), jnp.float32)
    return {"w1": w1, "b1": b1, "w2": w2, "gamma": gamma, "beta": beta, "w3": w3}


def _reference(x_nchw, params):
    """Pure-JAX f32 reference of the same forward pass (PyTorch training-mode BN)."""
    n, c, h, w = x_nchw.shape
    x = jnp.transpose(x_nchw, (0, 2, 3, 1)).reshape(n * h * w, c)
    h1 = _leaky(x @ params["w1"].T + params["b1"][None, :])
    h2 = h1 @ params["w2"].T
    mean = jnp.mean(h2, axis=0, keepdims=True)
    var = jnp.mean((h2 - mean) ** 2, axis=0, keepdims=True)
    h2n = _leaky((h2 - mean) * jax.lax.rsqrt(var + BN_EPS) * params["gamma"][None, :]
                 + params["beta"][None, :])
    out = h2n @ params["w3"].T
    return jnp.transpose(out.reshape(n, h, w, 1), (0, 3, 1, 2))


if __name__ == "__main__":
    key = jax.random.PRNGKey(0)
    kx, kp = jax.random.split(key)

    # NOTE: toy shape (ndf=8) is lane/sublane-sparse; real configs use ndf multiples of 64.
    N, C, H, W = 2, 4, 16, 16     # input_nc = 4, H*W = 256 pixels per image
    NDF = 8

    x = jax.random.normal(kx, (N, C, H, W), jnp.float32)
    params = init_params(kp, C, NDF)
    ref = jax.block_until_ready(_reference(x, params))

    # Path A: small tile -> 2 hw tiles -> exercises the 2-way split stats pass + combine.
    out_a = jax.block_until_ready(pixel_discriminator(x, params, tile_hw=128))
    assert out_a.shape == (N, 1, H, W), out_a.shape
    assert jnp.allclose(out_a, ref, atol=2e-2, rtol=2e-2), float(jnp.max(jnp.abs(out_a - ref)))

    # Path B: default (generation-aware) tile -> single tile per image, no split.
    out_b = jax.block_until_ready(pixel_discriminator(x, params))
    assert out_b.shape == (N, 1, H, W), out_b.shape
    assert jnp.allclose(out_b, ref, atol=2e-2, rtol=2e-2), float(jnp.max(jnp.abs(out_b - ref)))

    print("KERNEL_OK")
</pallas_src>

<mosaic_0001>
module attributes {stable_mosaic.version = 11 : i64} {
  func.func @bn_stats_kernel(%arg0: i32, %arg1: i32, %arg2: i32, %arg3: memref<1x4x128xf32, #tpu.memory_space<vmem>>, %arg4: memref<8x4xbf16, #tpu.memory_space<vmem>>, %arg5: memref<8x1xf32, #tpu.memory_space<vmem>>, %arg6: memref<16x8xbf16, #tpu.memory_space<vmem>>, %arg7: memref<1x16x2xf32, #tpu.memory_space<vmem>>, %arg8: memref<16x1xf32, #tpu.memory_space<vmem>>, %arg9: memref<16x1xf32, #tpu.memory_space<vmem>>) attributes {dimension_semantics = [#tpu.dimension_semantics<parallel>, #tpu.dimension_semantics<arbitrary>, #tpu.dimension_semantics<arbitrary>], iteration_bounds = array<i64: 2, 2, 1>, scalar_prefetch = 0 : i64, scratch_operands = 2 : i64, tpu.core_type = #tpu.core_type<tc>, window_params = [{transform_indices = @transform_0, window_bounds = array<i64: 1, 4, 128>}, {pipeline_mode = #tpu.pipeline_mode<synchronous>, transform_indices = @transform_1, window_bounds = array<i64: 8, 4>}, {pipeline_mode = #tpu.pipeline_mode<synchronous>, transform_indices = @transform_2, window_bounds = array<i64: 8, 1>}, {pipeline_mode = #tpu.pipeline_mode<synchronous>, transform_indices = @transform_3, window_bounds = array<i64: 16, 8>}, {transform_indices = @transform_4, window_bounds = array<i64: 1, 16, 2>}]} {
    %c0_i32 = arith.constant 0 : i32
    %0 = arith.cmpi eq, %arg1, %c0_i32 : i32
    %c0_i32_0 = arith.constant 0 : i32
    %1 = arith.cmpi eq, %arg2, %c0_i32_0 : i32
    %2 = arith.andi %0, %1 : i1
    %3 = arith.extui %2 : i1 to i32
    %c0_i32_1 = arith.constant 0 : i32
    %4 = arith.cmpi ne, %3, %c0_i32_1 : i32
    scf.if %4 {
      %cst_25 = arith.constant 0.000000e+00 : f32
      %37 = vector.broadcast %cst_25 : f32 to vector<16x1xf32>
      %c0_26 = arith.constant 0 : index
      %c0_27 = arith.constant 0 : index
      %38 = vector.load %arg8[%c0_26, %c0_27] : memref<16x1xf32, #tpu.memory_space<vmem>>, vector<16x1xf32>
      tpu.vector_store %arg8[%c0_26, %c0_27], %37 {strides = array<i32>} : memref<16x1xf32, #tpu.memory_space<vmem>>, vector<16x1xf32>,
      %cst_28 = arith.constant 0.000000e+00 : f32
      %39 = vector.broadcast %cst_28 : f32 to vector<16x1xf32>
      %c0_29 = arith.constant 0 : index
      %c0_30 = arith.constant 0 : index
      %40 = vector.load %arg9[%c0_29, %c0_30] : memref<16x1xf32, #tpu.memory_space<vmem>>, vector<16x1xf32>
      tpu.vector_store %arg9[%c0_29, %c0_30], %39 {strides = array<i32>} : memref<16x1xf32, #tpu.memory_space<vmem>>, vector<16x1xf32>,
    } else {
    }
    %c0 = arith.constant 0 : index
    %c0_2 = arith.constant 0 : index
    %c0_3 = arith.constant 0 : index
    %5 = vector.load %arg3[%c0, %c0_2, %c0_3] : memref<1x4x128xf32, #tpu.memory_space<vmem>>, vector<1x4x128xf32>
    %6 = vector.shape_cast %5 : vector<1x4x128xf32> to vector<4x128xf32>
    %7 = arith.truncf %6 : vector<4x128xf32> to vector<4x128xbf16>
    %c0_4 = arith.constant 0 : index
    %c0_5 = arith.constant 0 : index
    %8 = vector.load %arg4[%c0_4, %c0_5] : memref<8x4xbf16, #tpu.memory_space<vmem>>, vector<8x4xbf16>
    %cst = arith.constant dense<0.000000e+00> : vector<8x128xf32>
    %9 = tpu.matmul %8, %7, %cst {dimension_numbers = #tpu.dot_dimension_numbers<[1], [0], [0], [1], [0, 0, 1, 1], [], []>} : vector<8x4xbf16>, vector<4x128xbf16>, vector<8x128xf32> -> vector<8x128xf32>
    %c0_6 = arith.constant 0 : index
    %c0_7 = arith.constant 0 : index
    %10 = vector.load %arg5[%c0_6, %c0_7] : memref<8x1xf32, #tpu.memory_space<vmem>>, vector<8x1xf32>
    %11 = vector.broadcast %10 : vector<8x1xf32> to vector<8x128xf32>
    %12 = arith.addf %9, %11 : vector<8x128xf32>
    %cst_8 = arith.constant 0.000000e+00 : f32
    %13 = vector.broadcast %cst_8 : f32 to vector<8x128xf32>
    %14 = arith.cmpf ogt, %12, %13 : vector<8x128xf32>
    %cst_9 = arith.constant 2.000000e-01 : f32
    %15 = vector.broadcast %cst_9 : f32 to vector<8x128xf32>
    %16 = arith.mulf %15, %12 : vector<8x128xf32>
    %17 = arith.select %14, %12, %16 : vector<8x128xi1>, vector<8x128xf32>
    %c0_10 = arith.constant 0 : index
    %c0_11 = arith.constant 0 : index
    %18 = vector.load %arg6[%c0_10, %c0_11] : memref<16x8xbf16, #tpu.memory_space<vmem>>, vector<16x8xbf16>
    %19 = arith.truncf %17 : vector<8x128xf32> to vector<8x128xbf16>
    %cst_12 = arith.constant dense<0.000000e+00> : vector<16x128xf32>
    %20 = tpu.matmul %18, %19, %cst_12 {dimension_numbers = #tpu.dot_dimension_numbers<[1], [0], [0], [1], [0, 0, 1, 1], [], []>} : vector<16x8xbf16>, vector<8x128xbf16>, vector<16x128xf32> -> vector<16x128xf32>
    %c0_13 = arith.constant 0 : index
    %c0_14 = arith.constant 0 : index
    %21 = vector.load %arg8[%c0_13, %c0_14] : memref<16x1xf32, #tpu.memory_space<vmem>>, vector<16x1xf32>
    %cst_15 = arith.constant dense<0.000000e+00> : vector<16xf32>
    %22 = vector.multi_reduction <add>, %20, %cst_15 [1] : vector<16x128xf32> to vector<16xf32>
    %23 = vector.shape_cast %22 : vector<16xf32> to vector<16x1xf32>
    %24 = arith.addf %21, %23 : vector<16x1xf32>
    %c0_16 = arith.constant 0 : index
    %c0_17 = arith.constant 0 : index
    %25 = vector.load %arg8[%c0_16, %c0_17] : memref<16x1xf32, #tpu.memory_space<vmem>>, vector<16x1xf32>
    tpu.vector_store %arg8[%c0_16, %c0_17], %24 {strides = array<i32>} : memref<16x1xf32, #tpu.memory_space<vmem>>, vector<16x1xf32>,
    %c0_18 = arith.constant 0 : index
    %c0_19 = arith.constant 0 : index
    %26 = vector.load %arg9[%c0_18, %c0_19] : memref<16x1xf32, #tpu.memory_space<vmem>>, vector<16x1xf32>
    %27 = arith.mulf %20, %20 : vector<16x128xf32>
    %cst_20 = arith.constant dense<0.000000e+00> : vector<16xf32>
    %28 = vector.multi_reduction <add>, %27, %cst_20 [1] : vector<16x128xf32> to vector<16xf32>
    %29 = vector.shape_cast %28 : vector<16xf32> to vector<16x1xf32>
    %30 = arith.addf %26, %29 : vector<16x1xf32>
    %c0_21 = arith.constant 0 : index
    %c0_22 = arith.constant 0 : index
    %31 = vector.load %arg9[%c0_21, %c0_22] : memref<16x1xf32, #tpu.memory_space<vmem>>, vector<16x1xf32>
    tpu.vector_store %arg9[%c0_21, %c0_22], %30 {strides = array<i32>} : memref<16x1xf32, #tpu.memory_space<vmem>>, vector<16x1xf32>,
    %c1_i32 = arith.constant 1 : i32
    %32 = arith.cmpi eq, %arg1, %c1_i32 : i32
    %c0_i32_23 = arith.constant 0 : i32
    %33 = arith.cmpi eq, %arg2, %c0_i32_23 : i32
    %34 = arith.andi %32, %33 : i1
    %35 = arith.extui %34 : i1 to i32
    %c0_i32_24 = arith.constant 0 : i32
    %36 = arith.cmpi ne, %35, %c0_i32_24 : i32
    scf.if %36 {
      %c0_25 = arith.constant 0 : index
      %c0_26 = arith.constant 0 : index
      %37 = vector.load %arg8[%c0_25, %c0_26] : memref<16x1xf32, #tpu.memory_space<vmem>>, vector<16x1xf32>
      %c0_27 = arith.constant 0 : index
      %c0_28 = arith.constant 0 : index
      %c0_29 = arith.constant 0 : index
      %38 = vector.load %arg7[%c0_27, %c0_28, %c0_29] : memref<1x16x2xf32, #tpu.memory_space<vmem>>, vector<1x16x1xf32>
      %39 = vector.shape_cast %38 : vector<1x16x1xf32> to vector<16x1xf32>
      %40 = vector.shape_cast %37 : vector<16x1xf32> to vector<1x16x1xf32>
      tpu.vector_store %arg7[%c0_27, %c0_28, %c0_29], %40 {strides = array<i32>} : memref<1x16x2xf32, #tpu.memory_space<vmem>>, vector<1x16x1xf32>,
      %c0_30 = arith.constant 0 : index
      %c0_31 = arith.constant 0 : index
      %41 = vector.load %arg9[%c0_30, %c0_31] : memref<16x1xf32, #tpu.memory_space<vmem>>, vector<16x1xf32>
      %c0_32 = arith.constant 0 : index
      %c0_33 = arith.constant 0 : index
      %c1 = arith.constant 1 : index
      %42 = vector.load %arg7[%c0_32, %c0_33, %c1] : memref<1x16x2xf32, #tpu.memory_space<vmem>>, vector<1x16x1xf32>
      %43 = vector.shape_cast %42 : vector<1x16x1xf32> to vector<16x1xf32>
      %44 = vector.shape_cast %41 : vector<16x1xf32> to vector<1x16x1xf32>
      tpu.vector_store %arg7[%c0_32, %c0_33, %c1], %44 {strides = array<i32>} : memref<1x16x2xf32, #tpu.memory_space<vmem>>, vector<1x16x1xf32>,
    } else {
    }
    return
  }
  func.func @transform_0(%arg0: i32, %arg1: i32, %arg2: i32) -> (i32, i32, i32) {
    %c1_i32 = arith.constant 1 : i32
    %0 = arith.muli %arg0, %c1_i32 : i32
    %1 = arith.addi %0, %arg2 : i32
    %c0_i32 = arith.constant 0 : i32
    %c0_i32_0 = arith.constant 0 : i32
    return %arg1, %c0_i32, %1 : i32, i32, i32
  }
  func.func @transform_1(%arg0: i32, %arg1: i32, %arg2: i32) -> (i32, i32) {
    %c0_i32 = arith.constant 0 : i32
    %c0_i32_0 = arith.constant 0 : i32
    %c0_i32_1 = arith.constant 0 : i32
    return %c0_i32, %c0_i32_0 : i32, i32
  }
  func.func @transform_2(%arg0: i32, %arg1: i32, %arg2: i32) -> (i32, i32) {
    %c0_i32 = arith.constant 0 : i32
    %c0_i32_0 = arith.constant 0 : i32
    %c0_i32_1 = arith.constant 0 : i32
    return %c0_i32, %c0_i32_0 : i32, i32
  }
  func.func @transform_3(%arg0: i32, %arg1: i32, %arg2: i32) -> (i32, i32) {
    %c0_i32 = arith.constant 0 : i32
    %c0_i32_0 = arith.constant 0 : i32
    %c0_i32_1 = arith.constant 0 : i32
    return %c0_i32, %c0_i32_0 : i32, i32
  }
  func.func @transform_4(%arg0: i32, %arg1: i32, %arg2: i32) -> (i32, i32, i32) {
    %c0_i32 = arith.constant 0 : i32
    %c0_i32_0 = arith.constant 0 : i32
    %c0_i32_1 = arith.constant 0 : i32
    return %arg0, %c0_i32, %c0_i32_0 : i32, i32, i32
  }
}

</mosaic_0001>

<llo_original>
// kernel: tpu_custom_call.1
$region0: #{tpu_custom_call.1}
  #allocation0 [shape = 'u32[]', space=smem, size = 0x4, offset = 0x4, fixed_abs, tag = 'smem constant byte address 0x4 - core index']
  #allocation1 [shape = 'u32[144,128]{1,0:T(1,128)}', space=vmem, size = 0x12000, scoped, tag = 'internal scratch']
  #allocation2 [shape = 'f32[16,1]{1,0:T(8,128)}', space=vmem, size = 0x2000, scoped, tag = 'scratch operand']
  #allocation3 [shape = 'f32[16,1]{1,0:T(8,128)}', space=vmem, size = 0x2000, scoped, tag = 'scratch operand']
  %s0 = inlined_call_operand.vmem [shape: f32[2,4,256], index: 0, kind: input, shape index: {}]
  %s1 = inlined_call_operand.vmem [shape: bf16[8,4], index: 1, kind: input, shape index: {}]
  %s2 = inlined_call_operand.vmem [shape: f32[8,1], index: 2, kind: input, shape index: {}]
  %s3 = inlined_call_operand.vmem [shape: bf16[16,8], index: 3, kind: input, shape index: {}]
  %s4 = inlined_call_operand.vmem [shape: f32[2,16,2], index: 4, kind: output, shape index: {}]
  %s5 = sld [smem:[#allocation0]]
  $region57: #{tpu_custom_call.1} parent=0
    _
  %s7 = ssub.s32 1, %s5
  %s8 = scalar_select 0, %s7, %s5
  loop: start=0, step=1, limit=6
  $region2: #{tpu_custom_call.1} parent=0 // loop_pre_header
    _
  $region3: #{tpu_custom_call.1} parent=0 // loop_header
    %s10 = sphi 0, %s14
    %p11 = scmp.ge.s32.totalorder %s10, 6
    %s17 = sphi 0, %s36
    %s18 = sphi 0, %s32
    %s19 = sphi 0, %s28
    %s20 = sphi 0, %s17
    %s21 = sphi 0, %s18
    %s22 = sphi 0, %s19
    %s23 = sphi 0, %s20
    %s24 = sphi 0, %s21
    %s25 = sphi 0, %s22
    %s43 = sphi 0, %s45
    %s46 = sphi 0, %s43
    %s47 = sphi 0, %s46
    %s63 = sphi 0, %s47
    %s67 = sphi 0, %s67
    %s69 = sphi 0, %s67
    %s70 = sphi 0, %s69
    %s84 = sphi 0, %s70
    %s88 = sphi 0, %s88
    %s90 = sphi 0, %s88
    %s91 = sphi 0, %s90
    %s105 = sphi 0, %s91
    %s109 = sphi 0, %s109
    %s111 = sphi 0, %s109
    %s112 = sphi 0, %s111
    %s126 = sphi 0, %s112
    %s132 = sphi 0, %s134
    %s135 = sphi 0, %s132
    %s136 = sphi 0, %s135
    %s152 = sphi 0, %s136
  $region4: #{tpu_custom_call.1} parent=0 // loop_header_branch
    %13 = sbr.rel (%p11) target = $region8
  $region5: #{tpu_custom_call.1} parent=0 // loop_body
    %s15 = ssub.s32 %s10, 1
    %s16 = ssub.s32 %s10, 2
    %s26 = sadd.s32 1, %s19
    %p27 = scmp.ge.s32.totalorder %s26, 1
    %s28 = scalar_select %p27, 0, %s26
    %s29 = sadd.s32 1, %s18
    %s30 = scalar_select %p27, %s29, %s18
    %p31 = scmp.ge.s32.totalorder %s30, 2
    %s32 = scalar_select %p31, 0, %s30
    %s33 = sadd.s32 1, %s17
    %s34 = scalar_select %p31, %s33, %s17
    %p35 = scmp.ge.s32.totalorder %s34, 2
    %s36 = scalar_select %p35, 0, %s34
    %s37 = sadd.s32 %s17, %s19
    %s38 = sadd.s32 %s36, %s28
    %s39 = ssub.s32 %s18, %s32
    %s40 = ssub.s32 %s37, %s38
    %s41 = sor.u32 %s39, %s40
    %p42 = scmp.eq.s32.totalorder %s41, 0
    %s44 = sadd.s32 %s43, 1
    %s45 = scalar_select %p42, %s43, %s44
    %p48 = pneg %p42
    %p49 = scmp.eq.s32.totalorder %s10, 3
    %p50 = por %p48, %p49
    %p51 = scmp.ne.s32.totalorder %s43, %s46
    %p52 = scmp.eq.s32.totalorder %s10, 0
    %p53 = por %p51, %p52
    %p54 = scmp.ne.s32.totalorder %s43, %s46
    %p55 = scmp.eq.s32.totalorder %s15, 3
    %p56 = por %p54, %p55
    %p57 = scmp.ne.s32.totalorder %s46, %s47
    %p58 = scmp.eq.s32.totalorder %s15, 0
    %p59 = por %p57, %p58
    %p60 = scmp.ne.s32.totalorder %s46, %s47
    %p61 = scmp.eq.s32.totalorder %s16, 3
    %p62 = por %p60, %p61
    %p64 = scmp.ne.s32.totalorder %s47, %s63
    %p65 = scmp.eq.s32.totalorder %s16, 0
    %p66 = por %p64, %p65
    %s68 = sadd.s32 %s67, 1
    %p71 = scmp.eq.s32.totalorder %s10, 3
    %p72 = scmp.ne.s32.totalorder %s67, %s69
    %p73 = scmp.eq.s32.totalorder %s10, 0
    %p74 = por %p72, %p73
    %p75 = scmp.ne.s32.totalorder %s67, %s69
    %p76 = scmp.eq.s32.totalorder %s15, 3
    %p77 = por %p75, %p76
    %p78 = scmp.ne.s32.totalorder %s69, %s70
    %p79 = scmp.eq.s32.totalorder %s15, 0
    %p80 = por %p78, %p79
    %p81 = scmp.ne.s32.totalorder %s69, %s70
    %p82 = scmp.eq.s32.totalorder %s16, 3
    %p83 = por %p81, %p82
    %p85 = scmp.ne.s32.totalorder %s70, %s84
    %p86 = scmp.eq.s32.totalorder %s16, 0
    %p87 = por %p85, %p86
    %s89 = sadd.s32 %s88, 1
    %p92 = scmp.eq.s32.totalorder %s10, 3
    %p93 = scmp.ne.s32.totalorder %s88, %s90
    %p94 = scmp.eq.s32.totalorder %s10, 0
    %p95 = por %p93, %p94
    %p96 = scmp.ne.s32.totalorder %s88, %s90
    %p97 = scmp.eq.s32.totalorder %s15, 3
    %p98 = por %p96, %p97
    %p99 = scmp.ne.s32.totalorder %s90, %s91
    %p100 = scmp.eq.s32.totalorder %s15, 0
    %p101 = por %p99, %p100
    %p102 = scmp.ne.s32.totalorder %s90, %s91
    %p103 = scmp.eq.s32.totalorder %s16, 3
    %p104 = por %p102, %p103
    %p106 = scmp.ne.s32.totalorder %s91, %s105
    %p107 = scmp.eq.s32.totalorder %s16, 0
    %p108 = por %p106, %p107
    %s110 = sadd.s32 %s109, 1
    %p113 = scmp.eq.s32.totalorder %s10, 3
    %p114 = scmp.ne.s32.totalorder %s109, %s111
    %p115 = scmp.eq.s32.totalorder %s10, 0
    %p116 = por %p114, %p115
    %p117 = scmp.ne.s32.totalorder %s109, %s111
    %p118 = scmp.eq.s32.totalorder %s15, 3
    %p119 = por %p117, %p118
    %p120 = scmp.ne.s32.totalorder %s111, %s112
    %p121 = scmp.eq.s32.totalorder %s15, 0
    %p122 = por %p120, %p121
    %p123 = scmp.ne.s32.totalorder %s111, %s112
    %p124 = scmp.eq.s32.totalorder %s16, 3
    %p125 = por %p123, %p124
    %p127 = scmp.ne.s32.totalorder %s112, %s126
    %p128 = scmp.eq.s32.totalorder %s16, 0
    %p129 = por %p127, %p128
    %s130 = ssub.s32 %s17, %s36
    %p131 = scmp.eq.s32.totalorder %s130, 0
    %s133 = sadd.s32 %s132, 1
    %s134 = scalar_select %p131, %s132, %s133
    %p137 = pneg %p131
    %p138 = scmp.eq.s32.totalorder %s10, 3
    %p139 = por %p137, %p138
    %p140 = scmp.ne.s32.totalorder %s132, %s135
    %p141 = scmp.eq.s32.totalorder %s10, 0
    %p142 = por %p140, %p141
    %p143 = scmp.ne.s32.totalorder %s132, %s135
    %p144 = scmp.eq.s32.totalorder %s15, 3
    %p145 = por %p143, %p144
    %p146 = scmp.ne.s32.totalorder %s135, %s136
    %p147 = scmp.eq.s32.totalorder %s15, 0
    %p148 = por %p146, %p147
    %p149 = scmp.ne.s32.totalorder %s135, %s136
    %p150 = scmp.eq.s32.totalorder %s16, 3
    %p151 = por %p149, %p150
    %p153 = scmp.ne.s32.totalorder %s136, %s152
    %p154 = scmp.eq.s32.totalorder %s16, 0
    %p155 = por %p153, %p154
    %p156 = scmp.le.s32.totalorder 1, %s10
    %p157 = scmp.lt.s32.totalorder %s10, 5
    %p158 = pnand %p156, %p157
    %p159 = pneg %p158
    // Predicated region
    $region9: #{tpu_custom_call.1} parent=5 // pred_check
      _
    $region10: #{tpu_custom_call.1} parent=5 // pred_check_branch
      %161 = sbr.rel (%p158) target = $region12
    $region11: #{tpu_custom_call.1} parent=5 // pred_region
      %s162 = ssub.s32 %s10, 1
      // Predicated region
      $region13: #{tpu_custom_call.1} parent=11 // pred_check
        %p163 = pneg %p80
      $region14: #{tpu_custom_call.1} parent=11 // pred_check_branch
        %165 = sbr.rel (%p163) target = $region16
      $region15: #{tpu_custom_call.1} parent=11 // pred_region
        _
      $region16: #{tpu_custom_call.1} parent=11 // pred_fallthru
        _
      // Predicated region
      $region17: #{tpu_custom_call.1} parent=11 // pred_check
        %p166 = pneg %p101
      $region18: #{tpu_custom_call.1} parent=11 // pred_check_branch
        %168 = sbr.rel (%p166) target = $region20
      $region19: #{tpu_custom_call.1} parent=11 // pred_region
        _
      $region20: #{tpu_custom_call.1} parent=11 // pred_fallthru
        _
      // Predicated region
      $region21: #{tpu_custom_call.1} parent=11 // pred_check
        %p169 = pneg %p122
      $region22: #{tpu_custom_call.1} parent=11 // pred_check_branch
        %171 = sbr.rel (%p169) target = $region24
      $region23: #{tpu_custom_call.1} parent=11 // pred_region
        _
      $region24: #{tpu_custom_call.1} parent=11 // pred_fallthru
        _
    $region12: #{tpu_custom_call.1} parent=5 // pred_fallthru
      _
    %p172 = scmp.lt.s32.totalorder %s10, 4
    // Predicated region
    $region25: #{tpu_custom_call.1} parent=5 // pred_check
      %p173 = pneg %p172
    $region26: #{tpu_custom_call.1} parent=5 // pred_check_branch
      %175 = sbr.rel (%p173) target = $region28
    $region27: #{tpu_custom_call.1} parent=5 // pred_region
      // Predicated region
      $region29: #{tpu_custom_call.1} parent=27 // pred_check
        %p176 = pneg %p53
      $region30: #{tpu_custom_call.1} parent=27 // pred_check_branch
        %178 = sbr.rel (%p176) target = $region32
      $region31: #{tpu_custom_call.1} parent=27 // pred_region
        %s179 = sadd.s32 %s17, %s19
        %p180 = scmp.lt.s32.totalorder %s18, 1
        %s181 = scalar_select %p180, %s18, 1
        %p182 = scmp.lt.s32.totalorder %s179, 1
        %s183 = scalar_select %p182, %s179, 1
        %s184 = smul.addr %s181, 2
        %s185 = sadd.s32 %s183, %s184
        %s186 = smul.addr %s185, 4
        %s187 = scalar_lea.vmem %s0, %s186
        %s188 = sadd.s32 %s17, %s19
      $region32: #{tpu_custom_call.1} parent=27 // pred_fallthru
        _
    $region28: #{tpu_custom_call.1} parent=5 // pred_fallthru
      _
    %p189 = scmp.le.s32.totalorder 1, %s10
    %p190 = scmp.lt.s32.totalorder %s10, 5
    %p191 = pnand %p189, %p190
    %p192 = pneg %p191
    // Predicated region
    $region33: #{tpu_custom_call.1} parent=5 // pred_check
      _
    $region34: #{tpu_custom_call.1} parent=5 // pred_check_branch
      %194 = sbr.rel (%p191) target = $region36
    $region35: #{tpu_custom_call.1} parent=5 // pred_region
      %s195 = ssub.s32 %s10, 1
      %s196 = sadd.s32 %s20, %s22
      %p197 = scmp.lt.s32.totalorder %s21, 1
      %s198 = scalar_select %p197, %s21, 1
      %p199 = scmp.lt.s32.totalorder %s196, 1
      %s200 = scalar_select %p199, %s196, 1
      %s201 = smul.addr %s198, 2
      %s202 = sadd.s32 %s200, %s201
      %s203 = smul.addr %s202, 4
      %s204 = scalar_lea.vmem %s0, %s203
      %p205 = pneg %p59
      %p206 = pneg %p56
      %p207 = pneg %p80
      %p208 = pneg %p77
      %p209 = pneg %p101
      %p210 = pneg %p98
      %p211 = pneg %p122
      %p212 = pneg %p119
      %p213 = pneg %p148
      %p214 = pneg %p145
      %p215 = scmp.lt.s32.totalorder %s20, 1
      %s216 = scalar_select %p215, %s20, 1
      %s217 = smul.addr %s216, 2
      %s218 = smul.addr %s217, 8
      %s219 = scalar_lea.vmem %s4, %s218
      %s220 = sadd.s32 %s20, %s22
      %p221 = scmp.lt.s32.totalorder %s21, 1
      %s222 = scalar_select %p221, %s21, 1
      %p223 = scmp.lt.s32.totalorder %s220, 1
      %s224 = scalar_select %p223, %s220, 1
      %s225 = smul.addr %s222, 2
      %s226 = sadd.s32 %s224, %s225
      %s227 = smul.addr %s226, 4
      %s228 = scalar_lea.vmem %s0, %s227
      %s229 = sadd.s32 %s20, %s22
      %p230 = scmp.lt.s32.totalorder %s20, 1
      %s231 = scalar_select %p230, %s20, 1
      %s232 = smul.addr %s231, 2
      %s233 = smul.addr %s232, 8
      %s234 = scalar_lea.vmem %s4, %s233
      %p236 = scmp.eq.s32.totalorder %s21, 0
      %p237 = scmp.eq.s32.totalorder %s22, 0
      %p238 = pnand %p236, %p237
      %p239 = pneg %p238
      // Predicated region
      $region37: #{tpu_custom_call.1} parent=35 // pred_check
        _
      $region38: #{tpu_custom_call.1} parent=35 // pred_check_branch
        %241 = sbr.rel (%p238) target = $region40
      $region39: #{tpu_custom_call.1} parent=35 // pred_region
        %vm242 = vcmask 7168
        %243 = vst.msk [vmem:[#allocation2] sm:$0xff] %vm242, 0.0
        %244 = vst.msk [vmem:[#allocation2 + $0x8] sm:$0xff] %vm242, 0.0
        %245 = vst.msk [vmem:[#allocation3] sm:$0xff] %vm242, 0.0
        %246 = vst.msk [vmem:[#allocation3 + $0x8] sm:$0xff] %vm242, 0.0
      $region40: #{tpu_custom_call.1} parent=35 // pred_fallthru
        _
      %v247 = vld [vmem:[%s228] sm:$0xf]
      %v248 = vpack.c.bf16 %v247, %v247
      %v249 = vld [vmem:[%s1] sm:$0xf]
      %v250 = vld [vmem:[%s2] sm:$0xff]
      %252 = vset.pattern.permute.xlu0 0
      %253 = vperm.xlu0 %252, %v250
      %v254 = vpop.permute.xlu0 %253
      %vm256 = vcmask 31744
      %v258 = vsel %vm256, %v249, 0
      %vm260 = vcmask 1041408
      %v262 = vsel %vm260, %v248, 0
      %264 = vmatprep.subr.bf16.mxu0 0
      %265 = vmatpush1.bf16.msra.mxu0 %v262
      %266 = vmatprep.subr.bf16.mxu0 0
      %267 = vmatpush1.bf16.msra.mxu0 0
      %268 = vmatprep.subr.bf16.mxu0 0
      %269 = vmatpush1.bf16.msra.mxu0 0
      %270 = vmatprep.subr.bf16.mxu0 0
      %271 = vmatpush1.bf16.msra.mxu0 0
      %272 = vmatprep.subr.bf16.mxu0 0
      %273 = vmatpush1.bf16.msra.mxu0 0
      %274 = vmatprep.subr.bf16.mxu0 0
      %275 = vmatpush1.bf16.msra.mxu0 0
      %276 = vmatprep.subr.bf16.mxu0 0
      %277 = vmatpush1.bf16.msra.mxu0 0
      %278 = vmatprep.subr.bf16.mxu0 0
      %279 = vmatpush1.bf16.msra.mxu0 0
      %280 = vmatprep.subr.bf16.mxu0 0
      %281 = vmatpush1.bf16.msra.mxu0 0
      %282 = vmatprep.subr.bf16.mxu0 0
      %283 = vmatpush1.bf16.msra.mxu0 0
      %284 = vmatprep.subr.bf16.mxu0 0
      %285 = vmatpush1.bf16.msra.mxu0 0
      %286 = vmatprep.subr.bf16.mxu0 0
      %287 = vmatpush1.bf16.msra.mxu0 0
      %288 = vmatprep.subr.bf16.mxu0 0
      %289 = vmatpush1.bf16.msra.mxu0 0
      %290 = vmatprep.subr.bf16.mxu0 0
      %291 = vmatpush1.bf16.msra.mxu0 0
      %292 = vmatprep.subr.bf16.mxu0 0
      %293 = vmatpush1.bf16.msra.mxu0 0
      %294 = vmatprep.subr.bf16.mxu0 0
      %295 = vmatpush1.bf16.msra.mxu0 0
      %296 = vmatprep.mubr.bf16.mxu0 0
      %297 = vmatmul.mubr.bf16.gmra.mrb[0].mxu0 %v258
      %v298 = vpop.f32.mrb[0].mxu0
      %v299 = vadd.f32 %v254, %v298
      %v300 = vpop.f32.mrb[0].mxu0
      %v301 = vpop.f32.mrb[0].mxu0
      %v302 = vpop.f32.mrb[0].mxu0
      %303 = vdwg.mxu0
      %vm304 = vcmp.gt.f32.partialorder %v299, 0.0
      %v305 = vmul.f32 %v299, 0.2
      %v306 = vsel %vm304, %v299, %v305
      %v307 = vld [vmem:[%s3] sm:$0xf]
      %v308 = vld [vmem:[%s3 + $0x4] sm:$0xf]
      %v309 = vpack.c.bf16 %v306, %v306
      %v312 = vunpack.c.l.b16 %v307
      %v313 = vunpack.c.l.b16 %v308
      %v314 = vpack.c.b16 %v313, %v312
      %vm315 = vcmask 64512
      %v317 = vsel %vm315, %v314, 0
      %vm319 = vcmask 1043456
      %v321 = vsel %vm319, %v309, 0
      %323 = vmatprep.subr.bf16.mxu0 0
      %324 = vmatpush1.bf16.msra.mxu0 %v321
      %325 = vmatprep.subr.bf16.mxu0 0
      %326 = vmatpush1.bf16.msra.mxu0 0
      %327 = vmatprep.subr.bf16.mxu0 0
      %328 = vmatpush1.bf16.msra.mxu0 0
      %329 = vmatprep.subr.bf16.mxu0 0
      %330 = vmatpush1.bf16.msra.mxu0 0
      %331 = vmatprep.subr.bf16.mxu0 0
      %332 = vmatpush1.bf16.msra.mxu0 0
      %333 = vmatprep.subr.bf16.mxu0 0
      %334 = vmatpush1.bf16.msra.mxu0 0
      %335 = vmatprep.subr.bf16.mxu0 0
      %336 = vmatpush1.bf16.msra.mxu0 0
      %337 = vmatprep.subr.bf16.mxu0 0
      %338 = vmatpush1.bf16.msra.mxu0 0
      %339 = vmatprep.subr.bf16.mxu0 0
      %340 = vmatpush1.bf16.msra.mxu0 0
      %341 = vmatprep.subr.bf16.mxu0 0
      %342 = vmatpush1.bf16.msra.mxu0 0
      %343 = vmatprep.subr.bf16.mxu0 0
      %344 = vmatpush1.bf16.msra.mxu0 0
      %345 = vmatprep.subr.bf16.mxu0 0
      %346 = vmatpush1.bf16.msra.mxu0 0
      %347 = vmatprep.subr.bf16.mxu0 0
      %348 = vmatpush1.bf16.msra.mxu0 0
      %349 = vmatprep.subr.bf16.mxu0 0
      %350 = vmatpush1.bf16.msra.mxu0 0
      %351 = vmatprep.subr.bf16.mxu0 0
      %352 = vmatpush1.bf16.msra.mxu0 0
      %353 = vmatprep.subr.bf16.mxu0 0
      %354 = vmatpush1.bf16.msra.mxu0 0
      %355 = vmatprep.mubr.bf16.mxu0 0
      %356 = vmatmul.mubr.bf16.gmra.mrb[0].mxu0 %v317
      %v357 = vpop.f32.mrb[0].mxu0
      %v358 = vadd.f32 0.0, %v357
      %v359 = vpop.f32.mrb[0].mxu0
      %v360 = vpop.f32.mrb[0].mxu0
      %v361 = vadd.f32 0.0, %v360
      %v362 = vpop.f32.mrb[0].mxu0
      %363 = vdwg.mxu0
      %v364 = vld [vmem:[#allocation2] sm:$0xff]
      %v365 = vld [vmem:[#allocation2 + $0x8] sm:$0xff]
      %366 = vadd.xlane.f32.xlu0 %v358
      %v367 = vpop.xlane.xlu0 %366
      %368 = vadd.xlane.f32.xlu0 %v361
      %v369 = vpop.xlane.xlu0 %368
      %v370 = vadd.f32 %v364, %v367
      %v371 = vadd.f32 %v365, %v369
      %vm372 = vcmask 7168
      %373 = vst.msk [vmem:[#allocation2] sm:$0xff] %vm372, %v370
      %374 = vst.msk [vmem:[#allocation2 + $0x8] sm:$0xff] %vm372, %v371
      %v375 = vld [vmem:[#allocation3] sm:$0xff]
      %v376 = vld [vmem:[#allocation3 + $0x8] sm:$0xff]
      %v377 = vmul.f32 %v358, %v358
      %v378 = vmul.f32 %v361, %v361
      %379 = vadd.xlane.f32.xlu0 %v377
      %v380 = vpop.xlane.xlu0 %379
      %381 = vadd.xlane.f32.xlu0 %v378
      %v382 = vpop.xlane.xlu0 %381
      %v383 = vadd.f32 %v375, %v380
      %v384 = vadd.f32 %v376, %v382
      %385 = vst.msk [vmem:[#allocation3] sm:$0xff] %vm372, %v383
      %386 = vst.msk [vmem:[#allocation3 + $0x8] sm:$0xff] %vm372, %v384
      %p387 = scmp.eq.s32.totalorder %s21, 1
      %p388 = pnand %p387, %p237
      %p389 = pneg %p388
      // Predicated region
      $region41: #{tpu_custom_call.1} parent=35 // pred_check
        _
      $region42: #{tpu_custom_call.1} parent=35 // pred_check_branch
        %391 = sbr.rel (%p388) target = $region44
      $region43: #{tpu_custom_call.1} parent=35 // pred_region
        %v392 = vld [vmem:[#allocation2] sm:$0xff]
        %v393 = vld [vmem:[#allocation2 + $0x8] sm:$0xff]
        %394 = vst.msk [vmem:[%s234] sm:$0xff] %vm372, %v392
        %395 = vst.msk [vmem:[%s234 + $0x8] sm:$0xff] %vm372, %v393
        %v396 = vld [vmem:[#allocation3] sm:$0xff]
        %v397 = vld [vmem:[#allocation3 + $0x8] sm:$0xff]
        %400 = vrot.lane.b32.xlu0 %v396, 1
        %v401 = vpop.permute.xlu0 %400
        %402 = vrot.lane.b32.xlu0 %v397, 1
        %v403 = vpop.permute.xlu0 %402
        %vm406 = vcmask 15368
        %407 = vst.msk [vmem:[%s234] sm:$0xff] %vm406, %v401
        %408 = vst.msk [vmem:[%s234 + $0x8] sm:$0xff] %vm406, %v403
      $region44: #{tpu_custom_call.1} parent=35 // pred_fallthru
        _
      %p409 = scmp.lt.s32.totalorder %s20, 1
      %s410 = scalar_select %p409, %s20, 1
      %s411 = smul.addr %s410, 2
      %s412 = smul.addr %s411, 8
      %s413 = scalar_lea.vmem %s4, %s412
      // Predicated region
      $region45: #{tpu_custom_call.1} parent=35 // pred_check
        %p414 = pneg %p145
      $region46: #{tpu_custom_call.1} parent=35 // pred_check_branch
        %416 = sbr.rel (%p414) target = $region48
      $region47: #{tpu_custom_call.1} parent=35 // pred_region
        _
      $region48: #{tpu_custom_call.1} parent=35 // pred_fallthru
        _
    $region36: #{tpu_custom_call.1} parent=5 // pred_fallthru
      _
    %p417 = scmp.le.s32.totalorder 2, %s10
    // Predicated region
    $region49: #{tpu_custom_call.1} parent=5 // pred_check
      %p418 = pneg %p417
    $region50: #{tpu_custom_call.1} parent=5 // pred_check_branch
      %420 = sbr.rel (%p418) target = $region52
    $region51: #{tpu_custom_call.1} parent=5 // pred_region
      %s421 = ssub.s32 %s10, 2
      // Predicated region
      $region53: #{tpu_custom_call.1} parent=51 // pred_check
        %p422 = pneg %p151
      $region54: #{tpu_custom_call.1} parent=51 // pred_check_branch
        %424 = sbr.rel (%p422) target = $region56
      $region55: #{tpu_custom_call.1} parent=51 // pred_region
        %p425 = scmp.lt.s32.totalorder %s23, 1
        %s426 = scalar_select %p425, %s23, 1
        %s427 = smul.addr %s426, 2
        %s428 = smul.addr %s427, 8
        %s429 = scalar_lea.vmem %s4, %s428
      $region56: #{tpu_custom_call.1} parent=51 // pred_fallthru
        _
    $region52: #{tpu_custom_call.1} parent=5 // pred_fallthru
      _
  $region6: #{tpu_custom_call.1} parent=0 // loop_footer
    %s14 = sadd.s32 1, %s10
  $region7: #{tpu_custom_call.1} parent=0 // loop_footer_branch
    %9 = sbr.rel target = $region3
  $region8: #{tpu_custom_call.1} parent=0 // loop_exit
    _

</llo_original>
